<compile_context>
chip_gen: v5e
topology: v5e:2x2
jax: 0.10.0
libtpu: 0.0.40
codegen_flags: <defaults>
</compile_context>

<pallas_src>
import functools

import jax
import jax.numpy as jnp
from jax import lax
from jax.experimental import pallas as pl
from jax.experimental.pallas import tpu as pltpu


def _round_up(x, m):
    return ((x + m - 1) // m) * m


def _pad2d(a, rows, cols):
    return jnp.pad(a, ((0, rows - a.shape[0]), (0, cols - a.shape[1])))


def normalize_features_l2(x):
    """Row-wise L2 normalization (same as the PyTorch normalizeFeaturesL2 helper)."""
    return x / jnp.sqrt(jnp.sum(x * x, axis=-1, keepdims=True))


# ---------------------------------------------------------------------------
# Kernels
# ---------------------------------------------------------------------------
def _finalize_scores(xw_acc, attrs_ref):
    """Row-wise L2 normalize + class-attribute matmul (f32 accumulation)."""
    xw = xw_acc[...]                                                # [TB, A_pad] (bias already in)
    sumsq = jnp.sum(xw * xw, axis=1, keepdims=True)                 # [TB, 1]
    xwn = xw * lax.rsqrt(jnp.maximum(sumsq, 1e-30))                 # guard rsqrt(0); EUP
    return jnp.dot(xwn.astype(attrs_ref.dtype), attrs_ref[...],
                   preferred_element_type=jnp.float32)              # [TB, C_pad]


def sje_train_kernel(x_ref, wT_ref, b_ref, attrs_ref, labels_ref,
                     loss_ref, xw_acc, *, margin, num_classes):
    k = pl.program_id(1)

    @pl.when(k == 0)
    def _():
        # Fold the bias into the accumulator init (saves an epilogue add).
        xw_acc[...] = jnp.broadcast_to(b_ref[...].astype(jnp.float32),
                                       xw_acc.shape)

    # K-tiled projection: accumulate x_tile @ wT_tile into the f32 scratch.
    xw_acc[...] += jnp.dot(x_ref[...], wT_ref[...],
                           preferred_element_type=jnp.float32)

    @pl.when(k == pl.num_programs(1) - 1)
    def _():
        scores = _finalize_scores(xw_acc, attrs_ref)                # [TB, C_pad]
        col = lax.broadcasted_iota(jnp.int32, scores.shape, 1)
        gt_mask = col == labels_ref[...]                            # one-hot of labels
        pad_mask = col >= num_classes                               # padded class cols
        gt_score = jnp.sum(jnp.where(gt_mask, scores, 0.0),
                           axis=1, keepdims=True)                   # [TB, 1]
        # Hinge in one cross-lane reduce: max over non-gt, valid columns.
        cand = jnp.where(gt_mask | pad_mask, -jnp.inf, scores)
        per_ex = jnp.max(cand, axis=1, keepdims=True) - gt_score + margin
        per_ex = jnp.maximum(per_ex, 0.0)                           # [TB, 1]
        # Lane-dense (unmasked) store: broadcast across the 128-lane axis;
        # the wrapper reads column 0.
        loss_ref[...] = jnp.broadcast_to(per_ex, loss_ref.shape)


def sje_test_kernel(x_ref, wT_ref, b_ref, attrs_ref,
                    preds_ref, xw_acc, *, num_classes):
    k = pl.program_id(1)

    @pl.when(k == 0)
    def _():
        xw_acc[...] = jnp.broadcast_to(b_ref[...].astype(jnp.float32),
                                       xw_acc.shape)

    xw_acc[...] += jnp.dot(x_ref[...], wT_ref[...],
                           preferred_element_type=jnp.float32)

    @pl.when(k == pl.num_programs(1) - 1)
    def _():
        scores = _finalize_scores(xw_acc, attrs_ref)                # [TB, C_pad]
        col = lax.broadcasted_iota(jnp.int32, scores.shape, 1)
        cand = jnp.where(col < num_classes, scores, -jnp.inf)
        row_max = jnp.max(cand, axis=1, keepdims=True)
        # argmax = first column achieving the row max (matches jnp.argmax).
        idx = jnp.min(jnp.where(cand == row_max, col, scores.shape[1]),
                      axis=1, keepdims=True)                        # [TB, 1]
        preds_ref[...] = jnp.broadcast_to(idx, preds_ref.shape).astype(jnp.int32)


# ---------------------------------------------------------------------------
# Module wrapper
# ---------------------------------------------------------------------------
class SJELinearPallas:
    def __init__(self, img_feature_size, num_attributes, margin, key,
                 matmul_dtype=jnp.float32, batch_tile=None, k_tile=None):
        kw, kb = jax.random.split(key)
        bound = 1.0 / (img_feature_size ** 0.5)
        w = jax.random.uniform(kw, (num_attributes, img_feature_size),
                               jnp.float32, -bound, bound)
        # nn.Linear weight rows are L2-normalized in __init__.
        self.weight = normalize_features_l2(w)                       # [A, F]
        self.bias = jax.random.uniform(kb, (num_attributes,),
                                       jnp.float32, -bound, bound)   # [A]
        self.margin = float(margin)
        # Use jnp.bfloat16 on v6e/v7x for 2x MXU throughput + half the HBM/VMEM
        # traffic of x/wT/attrs (accumulation & epilogue stay f32 in-kernel).
        self.matmul_dtype = matmul_dtype
        self.batch_tile = batch_tile      # optional overrides (must be sane)
        self.k_tile = k_tile

    # -- tiling / padding ----------------------------------------------------
    def _tiles(self, B, F):
        if self.batch_tile is not None:
            TB = _round_up(self.batch_tile, 8)
        else:
            TB = 512 if B >= 512 else _round_up(B, 8)
        B_pad = _round_up(B, TB)
        if self.k_tile is not None:
            TK = _round_up(self.k_tile, 128)
            F_pad = _round_up(F, TK)
        elif F <= 1024:
            TK, F_pad = F, F                   # single K step, no F padding
        else:
            TK, F_pad = 512, _round_up(F, 512)
        return TB, B_pad, TK, F_pad

    def _prepare(self, img_features, all_class_attributes):
        B, F = img_features.shape
        A, C = all_class_attributes.shape
        TB, B_pad, TK, F_pad = self._tiles(B, F)
        A_pad = _round_up(A, 128)              # MXU/lane aligned
        C_pad = _round_up(C, 128)
        x = _pad2d(img_features.astype(self.matmul_dtype), B_pad, F_pad)
        wT = _pad2d(self.weight.T.astype(self.matmul_dtype), F_pad, A_pad)
        bias = _pad2d(self.bias.reshape(1, -1).astype(jnp.float32), 1, A_pad)
        attrs = _pad2d(all_class_attributes.astype(self.matmul_dtype), A_pad, C_pad)
        dims = dict(B=B, C=C, TB=TB, B_pad=B_pad, TK=TK, F_pad=F_pad,
                    A_pad=A_pad, C_pad=C_pad)
        return x, wT, bias, attrs, dims

    @staticmethod
    def _compiler_params():
        return pltpu.CompilerParams(
            dimension_semantics=("parallel", "arbitrary"),
            vmem_limit_bytes=32 * 1024 * 1024,   # >= defaults on all of v5e/v6e/v7x
        )

    # -- forward paths ---------------------------------------------------------
    def forward_train(self, img_features, all_class_attributes,
                      class_attributes, labels):
        del class_attributes  # unused, exactly like the PyTorch forward_train
        x, wT, bias, attrs, d = self._prepare(img_features, all_class_attributes)
        B, C = d["B"], d["C"]
        TB, B_pad, TK, F_pad = d["TB"], d["B_pad"], d["TK"], d["F_pad"]
        A_pad, C_pad = d["A_pad"], d["C_pad"]
        num_b, num_k = B_pad // TB, F_pad // TK

        # TODO(synk): labels could be scalar-prefetched into SMEM; the (TB, 1)
        # VMEM block is negligible traffic so it is kept simple here.
        labels2d = jnp.pad(labels.astype(jnp.int32).reshape(-1, 1),
                           ((0, B_pad - B), (0, 0)))

        kernel = functools.partial(sje_train_kernel, margin=self.margin,
                                   num_classes=C)
        per_example = pl.pallas_call(
            kernel,
            out_shape=jax.ShapeDtypeStruct((B_pad, 128), jnp.float32),
            grid_spec=pltpu.PrefetchScalarGridSpec(
                num_scalar_prefetch=0,
                grid=(num_b, num_k),
                in_specs=[
                    pl.BlockSpec((TB, TK), lambda i, k: (i, k)),        # x tile
                    pl.BlockSpec((TK, A_pad), lambda i, k: (k, 0)),     # wT tile
                    pl.BlockSpec((1, A_pad), lambda i, k: (0, 0)),      # bias (resident)
                    pl.BlockSpec((A_pad, C_pad), lambda i, k: (0, 0)),  # attrs (resident)
                    pl.BlockSpec((TB, 1), lambda i, k: (i, 0)),         # labels tile
                ],
                out_specs=pl.BlockSpec((TB, 128), lambda i, k: (i, 0)),
                scratch_shapes=[pltpu.VMEM((TB, A_pad), jnp.float32)],
            ),
            compiler_params=self._compiler_params(),
        )(x, wT, bias, attrs, labels2d)
        # Mean over real (unpadded) rows only.
        return jnp.mean(per_example[:B, 0])

    def forward_test(self, img_features, all_class_attributes):
        x, wT, bias, attrs, d = self._prepare(img_features, all_class_attributes)
        B, C = d["B"], d["C"]
        TB, B_pad, TK, F_pad = d["TB"], d["B_pad"], d["TK"], d["F_pad"]
        A_pad, C_pad = d["A_pad"], d["C_pad"]
        num_b, num_k = B_pad // TB, F_pad // TK

        kernel = functools.partial(sje_test_kernel, num_classes=C)
        preds = pl.pallas_call(
            kernel,
            out_shape=jax.ShapeDtypeStruct((B_pad, 128), jnp.int32),
            grid_spec=pltpu.PrefetchScalarGridSpec(
                num_scalar_prefetch=0,
                grid=(num_b, num_k),
                in_specs=[
                    pl.BlockSpec((TB, TK), lambda i, k: (i, k)),        # x tile
                    pl.BlockSpec((TK, A_pad), lambda i, k: (k, 0)),     # wT tile
                    pl.BlockSpec((1, A_pad), lambda i, k: (0, 0)),      # bias
                    pl.BlockSpec((A_pad, C_pad), lambda i, k: (0, 0)),  # attrs
                ],
                out_specs=pl.BlockSpec((TB, 128), lambda i, k: (i, 0)),
                scratch_shapes=[pltpu.VMEM((TB, A_pad), jnp.float32)],
            ),
            compiler_params=self._compiler_params(),
        )(x, wT, bias, attrs)
        return preds[:B, 0]


# ---------------------------------------------------------------------------
# Pure-JAX references (match the PyTorch code)
# ---------------------------------------------------------------------------
def _reference_train(model, x, attrs, labels):
    xw = normalize_features_l2(x @ model.weight.T + model.bias)
    scores = xw @ attrs
    gt = scores[jnp.arange(scores.shape[0]), labels][:, None]
    losses = model.margin + scores - gt
    losses = losses.at[jnp.arange(losses.shape[0]), labels].set(0.0)
    return jnp.mean(jnp.clip(jnp.max(losses, axis=1), 0.0, None))


def _reference_test(model, x, attrs):
    xw = normalize_features_l2(x @ model.weight.T + model.bias)
    return jnp.argmax(xw @ attrs, axis=1)


if __name__ == "__main__":
    B = 20                # batch (not a multiple of the batch tile -> tail padding)
    F = 256               # img_feature_size
    A = 16                # num_attributes (padded to 128 inside)
    C = 10                # num_classes   (padded to 128 + masked inside)
    margin = 1.0

    key = jax.random.PRNGKey(0)
    k_model, k_x, k_attrs, k_lab = jax.random.split(key, 4)

    # Small tiles so the demo exercises the (batch, K) grid, batch-tail padding
    # and the A/C padding + class-mask paths while staying tiny.
    model = SJELinearPallas(F, A, margin, k_model, batch_tile=8, k_tile=128)

    img_features = jax.random.normal(k_x, (B, F), jnp.float32)
    all_class_attributes = jax.random.normal(k_attrs, (A, C), jnp.float32)
    labels = jax.random.randint(k_lab, (B,), 0, C, jnp.int32)
    class_attributes = all_class_attributes.T[labels]   # [B, A] (unused, mirrors PyTorch API)

    # --- training path ---
    loss = model.forward_train(img_features, all_class_attributes,
                               class_attributes, labels)
    loss = jax.block_until_ready(loss)
    ref_loss = _reference_train(model, img_features, all_class_attributes, labels)
    assert jnp.allclose(loss, ref_loss, atol=1e-4, rtol=1e-4), (loss, ref_loss)

    # --- test path ---
    preds = model.forward_test(img_features, all_class_attributes)
    preds = jax.block_until_ready(preds)
    ref_preds = _reference_test(model, img_features, all_class_attributes)
    assert jnp.array_equal(preds, ref_preds), (preds, ref_preds)

    print("KERNEL_OK")
</pallas_src>

<mosaic_0001>
module attributes {stable_mosaic.version = 11 : i64} {
  func.func @sje_train_kernel(%arg0: i32, %arg1: i32, %arg2: memref<8x128xf32, #tpu.memory_space<vmem>>, %arg3: memref<128x128xf32, #tpu.memory_space<vmem>>, %arg4: memref<1x128xf32, #tpu.memory_space<vmem>>, %arg5: memref<128x128xf32, #tpu.memory_space<vmem>>, %arg6: memref<8x1xi32, #tpu.memory_space<vmem>>, %arg7: memref<8x128xf32, #tpu.memory_space<vmem>>, %arg8: memref<8x128xf32, #tpu.memory_space<vmem>>) attributes {dimension_semantics = [#tpu.dimension_semantics<parallel>, #tpu.dimension_semantics<arbitrary>], iteration_bounds = array<i64: 3, 2>, scalar_prefetch = 0 : i64, scratch_operands = 1 : i64, tpu.core_type = #tpu.core_type<tc>, window_params = [{transform_indices = @transform_0, window_bounds = array<i64: 8, 128>}, {transform_indices = @transform_1, window_bounds = array<i64: 128, 128>}, {pipeline_mode = #tpu.pipeline_mode<synchronous>, transform_indices = @transform_2, window_bounds = array<i64: 1, 128>}, {pipeline_mode = #tpu.pipeline_mode<synchronous>, transform_indices = @transform_3, window_bounds = array<i64: 128, 128>}, {transform_indices = @transform_4, window_bounds = array<i64: 8, 1>}, {transform_indices = @transform_5, window_bounds = array<i64: 8, 128>}]} {
    %c0_i32 = arith.constant 0 : i32
    %0 = arith.cmpi eq, %arg1, %c0_i32 : i32
    %1 = arith.extui %0 : i1 to i32
    %c0_i32_0 = arith.constant 0 : i32
    %2 = arith.cmpi ne, %1, %c0_i32_0 : i32
    scf.if %2 {
      %c0_9 = arith.constant 0 : index
      %c0_10 = arith.constant 0 : index
      %12 = vector.load %arg4[%c0_9, %c0_10] : memref<1x128xf32, #tpu.memory_space<vmem>>, vector<1x128xf32>
      %13 = vector.shape_cast %12 : vector<1x128xf32> to vector<1x128xf32>
      %14 = vector.broadcast %13 : vector<1x128xf32> to vector<8x128xf32>
      %c0_11 = arith.constant 0 : index
      %c0_12 = arith.constant 0 : index
      %15 = vector.load %arg8[%c0_11, %c0_12] : memref<8x128xf32, #tpu.memory_space<vmem>>, vector<8x128xf32>
      tpu.vector_store %arg8[%c0_11, %c0_12], %14 {strides = array<i32>} : memref<8x128xf32, #tpu.memory_space<vmem>>, vector<8x128xf32>,
    } else {
    }
    %c0 = arith.constant 0 : index
    %c0_1 = arith.constant 0 : index
    %3 = vector.load %arg8[%c0, %c0_1] : memref<8x128xf32, #tpu.memory_space<vmem>>, vector<8x128xf32>
    %c0_2 = arith.constant 0 : index
    %c0_3 = arith.constant 0 : index
    %4 = vector.load %arg2[%c0_2, %c0_3] : memref<8x128xf32, #tpu.memory_space<vmem>>, vector<8x128xf32>
    %c0_4 = arith.constant 0 : index
    %c0_5 = arith.constant 0 : index
    %5 = vector.load %arg3[%c0_4, %c0_5] : memref<128x128xf32, #tpu.memory_space<vmem>>, vector<128x128xf32>
    %cst = arith.constant dense<0.000000e+00> : vector<8x128xf32>
    %6 = tpu.matmul %4, %5, %cst {dimension_numbers = #tpu.dot_dimension_numbers<[1], [0], [0], [1], [0, 0, 1, 1], [], []>} : vector<8x128xf32>, vector<128x128xf32>, vector<8x128xf32> -> vector<8x128xf32>
    %7 = arith.addf %3, %6 : vector<8x128xf32>
    %c0_6 = arith.constant 0 : index
    %c0_7 = arith.constant 0 : index
    %8 = vector.load %arg8[%c0_6, %c0_7] : memref<8x128xf32, #tpu.memory_space<vmem>>, vector<8x128xf32>
    tpu.vector_store %arg8[%c0_6, %c0_7], %7 {strides = array<i32>} : memref<8x128xf32, #tpu.memory_space<vmem>>, vector<8x128xf32>,
    %c1_i32 = arith.constant 1 : i32
    %9 = arith.cmpi eq, %arg1, %c1_i32 : i32
    %10 = arith.extui %9 : i1 to i32
    %c0_i32_8 = arith.constant 0 : i32
    %11 = arith.cmpi ne, %10, %c0_i32_8 : i32
    scf.if %11 {
      %c0_9 = arith.constant 0 : index
      %c0_10 = arith.constant 0 : index
      %12 = vector.load %arg8[%c0_9, %c0_10] : memref<8x128xf32, #tpu.memory_space<vmem>>, vector<8x128xf32>
      %13 = arith.mulf %12, %12 : vector<8x128xf32>
      %cst_11 = arith.constant dense<0.000000e+00> : vector<8xf32>
      %14 = vector.multi_reduction <add>, %13, %cst_11 [1] : vector<8x128xf32> to vector<8xf32>
      %15 = vector.shape_cast %14 : vector<8xf32> to vector<8x1xf32>
      %cst_12 = arith.constant 1.000000e-30 : f32
      %16 = vector.broadcast %cst_12 : f32 to vector<8x1xf32>
      %17 = arith.maximumf %15, %16 : vector<8x1xf32>
      %18 = math.rsqrt %17 : vector<8x1xf32>
      %19 = vector.broadcast %18 : vector<8x1xf32> to vector<8x128xf32>
      %20 = arith.mulf %12, %19 : vector<8x128xf32>
      %c0_13 = arith.constant 0 : index
      %c0_14 = arith.constant 0 : index
      %21 = vector.load %arg5[%c0_13, %c0_14] : memref<128x128xf32, #tpu.memory_space<vmem>>, vector<128x128xf32>
      %cst_15 = arith.constant dense<0.000000e+00> : vector<8x128xf32>
      %22 = tpu.matmul %20, %21, %cst_15 {dimension_numbers = #tpu.dot_dimension_numbers<[1], [0], [0], [1], [0, 0, 1, 1], [], []>} : vector<8x128xf32>, vector<128x128xf32>, vector<8x128xf32> -> vector<8x128xf32>
      %23 = tpu.iota {dimensions = array<i32: 1>} : vector<8x128xi32>
      %c0_16 = arith.constant 0 : index
      %c0_17 = arith.constant 0 : index
      %24 = vector.load %arg6[%c0_16, %c0_17] : memref<8x1xi32, #tpu.memory_space<vmem>>, vector<8x1xi32>
      %25 = vector.broadcast %24 : vector<8x1xi32> to vector<8x128xi32>
      %26 = arith.cmpi eq, %23, %25 : vector<8x128xi32>
      %c10_i32 = arith.constant 10 : i32
      %27 = vector.broadcast %c10_i32 : i32 to vector<8x128xi32>
      %28 = arith.cmpi sge, %23, %27 : vector<8x128xi32>
      %cst_18 = arith.constant 0.000000e+00 : f32
      %29 = vector.broadcast %cst_18 : f32 to vector<8x128xf32>
      %30 = arith.select %26, %22, %29 : vector<8x128xi1>, vector<8x128xf32>
      %cst_19 = arith.constant dense<0.000000e+00> : vector<8xf32>
      %31 = vector.multi_reduction <add>, %30, %cst_19 [1] : vector<8x128xf32> to vector<8xf32>
      %32 = vector.shape_cast %31 : vector<8xf32> to vector<8x1xf32>
      %33 = arith.ori %26, %28 : vector<8x128xi1>
      %cst_20 = arith.constant 0xFF800000 : f32
      %34 = vector.broadcast %cst_20 : f32 to vector<8x128xf32>
      %35 = arith.select %33, %34, %22 : vector<8x128xi1>, vector<8x128xf32>
      %cst_21 = arith.constant dense<0xFF800000> : vector<8xf32>
      %36 = vector.multi_reduction <maximumf>, %35, %cst_21 [1] : vector<8x128xf32> to vector<8xf32>
      %37 = vector.shape_cast %36 : vector<8xf32> to vector<8x1xf32>
      %38 = arith.subf %37, %32 : vector<8x1xf32>
      %cst_22 = arith.constant 1.000000e+00 : f32
      %39 = vector.broadcast %cst_22 : f32 to vector<8x1xf32>
      %40 = arith.addf %38, %39 : vector<8x1xf32>
      %cst_23 = arith.constant 0.000000e+00 : f32
      %41 = vector.broadcast %cst_23 : f32 to vector<8x1xf32>
      %42 = arith.maximumf %40, %41 : vector<8x1xf32>
      %43 = vector.shape_cast %42 : vector<8x1xf32> to vector<8x1xf32>
      %44 = vector.broadcast %43 : vector<8x1xf32> to vector<8x128xf32>
      %c0_24 = arith.constant 0 : index
      %c0_25 = arith.constant 0 : index
      %45 = vector.load %arg7[%c0_24, %c0_25] : memref<8x128xf32, #tpu.memory_space<vmem>>, vector<8x128xf32>
      tpu.vector_store %arg7[%c0_24, %c0_25], %44 {strides = array<i32>} : memref<8x128xf32, #tpu.memory_space<vmem>>, vector<8x128xf32>,
    } else {
    }
    return
  }
  func.func @transform_0(%arg0: i32, %arg1: i32) -> (i32, i32) {
    %c0_i32 = arith.constant 0 : i32
    return %arg0, %arg1 : i32, i32
  }
  func.func @transform_1(%arg0: i32, %arg1: i32) -> (i32, i32) {
    %c0_i32 = arith.constant 0 : i32
    %c0_i32_0 = arith.constant 0 : i32
    return %arg1, %c0_i32 : i32, i32
  }
  func.func @transform_2(%arg0: i32, %arg1: i32) -> (i32, i32) {
    %c0_i32 = arith.constant 0 : i32
    %c0_i32_0 = arith.constant 0 : i32
    %c0_i32_1 = arith.constant 0 : i32
    return %c0_i32, %c0_i32_0 : i32, i32
  }
  func.func @transform_3(%arg0: i32, %arg1: i32) -> (i32, i32) {
    %c0_i32 = arith.constant 0 : i32
    %c0_i32_0 = arith.constant 0 : i32
    %c0_i32_1 = arith.constant 0 : i32
    return %c0_i32, %c0_i32_0 : i32, i32
  }
  func.func @transform_4(%arg0: i32, %arg1: i32) -> (i32, i32) {
    %c0_i32 = arith.constant 0 : i32
    %c0_i32_0 = arith.constant 0 : i32
    return %arg0, %c0_i32 : i32, i32
  }
  func.func @transform_5(%arg0: i32, %arg1: i32) -> (i32, i32) {
    %c0_i32 = arith.constant 0 : i32
    %c0_i32_0 = arith.constant 0 : i32
    return %arg0, %c0_i32 : i32, i32
  }
}

</mosaic_0001>

<llo_original>
// kernel: tpu_custom_call.1
$region0: #{tpu_custom_call.1}
  #allocation0 [shape = 'u32[]', space=smem, size = 0x4, offset = 0x4, fixed_abs, tag = 'smem constant byte address 0x4 - core index']
  #allocation1 [shape = 'u32[72,128]{1,0:T(1,128)}', space=vmem, size = 0x9000, scoped, tag = 'internal scratch']
  #allocation2 [shape = 'f32[8,128]{1,0:T(8,128)}', space=vmem, size = 0x1000, scoped, tag = 'scratch operand']
  %s0 = inlined_call_operand.hbm [shape: f32[24,256], index: 0, kind: input, shape index: {}]
  %s1 = inlined_call_operand.hbm [shape: f32[256,128], index: 1, kind: input, shape index: {}]
  %s2 = inlined_call_operand.vmem [shape: f32[1,128], index: 2, kind: input, shape index: {}]
  %s3 = inlined_call_operand.hbm [shape: f32[128,128], index: 3, kind: input, shape index: {}]
  %s4 = inlined_call_operand.vmem [shape: s32[24,1], index: 4, kind: input, shape index: {}]
  %s5 = inlined_call_operand.hbm [shape: f32[24,128], index: 5, kind: output, shape index: {}]
  %s6 = sld [smem:[#allocation0]]
  $region73: #{tpu_custom_call.1} parent=0
    _
  %s8 = ssub.s32 1, %s6
  %s9 = scalar_select 0, %s8, %s6
  $region1: #{tpu_custom_call.1} parent=0
    #allocation3 [shape = 'u8[8192]{0}', space=vmem, size = 0x2000, scoped, tag = 'input window, operand 0']
    #allocation4 [shape = 's32[2]{0}', space=sflag, size = 0x8, scoped, tag = 'scoped memory for tpu_custom_call.1']
    #allocation5 [shape = 's32[2]{0}', space=sflag, size = 0x8, scoped, tag = 'scoped memory for tpu_custom_call.1']
    #allocation6 [shape = 'u8[131072]{0}', space=vmem, size = 0x20000, scoped, tag = 'input window, operand 1']
    #allocation7 [shape = 's32[2]{0}', space=sflag, size = 0x8, scoped, tag = 'scoped memory for tpu_custom_call.1']
    #allocation8 [shape = 'u8[65536]{0}', space=vmem, size = 0x10000, scoped, tag = 'input window, operand 3, single buffered']
    #allocation9 [shape = 'u8[8192]{0}', space=vmem, size = 0x2000, scoped, tag = 'output window, operand 0']
    %10 = vsyncpa [#allocation4], 0
    %s11 = scalar_lea.sflag [#allocation4], 1
    %12 = vsyncpa %s11, 0
    %13 = vsyncpa [#allocation7], 0
    %s14 = scalar_lea.sflag [#allocation7], 1
    %15 = vsyncpa %s14, 0
    %16 = vsyncpa [#allocation5], 0
    %s17 = scalar_lea.sflag [#allocation5], 1
    %18 = vsyncpa %s17, 0
    loop: start=0, step=1, limit=8
    $region2: #{tpu_custom_call.1} parent=1 // loop_pre_header
      _
    $region3: #{tpu_custom_call.1} parent=1 // loop_header
      %s20 = sphi 0, %s24
      %p21 = scmp.ge.s32.totalorder %s20, 8
      %s27 = sphi 0, %s39
      %s28 = sphi 0, %s35
      %s29 = sphi 0, %s27
      %s30 = sphi 0, %s28
      %s31 = sphi 0, %s29
      %s32 = sphi 0, %s30
      %s44 = sphi 0, %s46
      %s47 = sphi 0, %s44
      %s48 = sphi 0, %s47
      %s64 = sphi 0, %s48
      %s70 = sphi 0, %s72
      %s73 = sphi 0, %s70
      %s74 = sphi 0, %s73
      %s90 = sphi 0, %s74
      %s94 = sphi 0, %s94
      %s96 = sphi 0, %s94
      %s97 = sphi 0, %s96
      %s111 = sphi 0, %s97
      %s115 = sphi 0, %s115
      %s117 = sphi 0, %s115
      %s118 = sphi 0, %s117
      %s132 = sphi 0, %s118
      %s138 = sphi 0, %s140
      %s141 = sphi 0, %s138
      %s142 = sphi 0, %s141
      %s158 = sphi 0, %s142
      %s164 = sphi 0, %s166
      %s167 = sphi 0, %s164
      %s168 = sphi 0, %s167
      %s184 = sphi 0, %s168
    $region4: #{tpu_custom_call.1} parent=1 // loop_header_branch
      %23 = sbr.rel (%p21) target = $region8
    $region5: #{tpu_custom_call.1} parent=1 // loop_body
      %s25 = ssub.s32 %s20, 1
      %s26 = ssub.s32 %s20, 2
      %s33 = sadd.s32 1, %s28
      %p34 = scmp.ge.s32.totalorder %s33, 2
      %s35 = scalar_select %p34, 0, %s33
      %s36 = sadd.s32 1, %s27
      %s37 = scalar_select %p34, %s36, %s27
      %p38 = scmp.ge.s32.totalorder %s37, 3
      %s39 = scalar_select %p38, 0, %s37
      %s40 = ssub.s32 %s27, %s39
      %s41 = ssub.s32 %s28, %s35
      %s42 = sor.u32 %s40, %s41
      %p43 = scmp.eq.s32.totalorder %s42, 0
      %s45 = sadd.s32 %s44, 1
      %s46 = scalar_select %p43, %s44, %s45
      %p49 = pneg %p43
      %p50 = scmp.eq.s32.totalorder %s20, 5
      %p51 = por %p49, %p50
      %p52 = scmp.ne.s32.totalorder %s44, %s47
      %p53 = scmp.eq.s32.totalorder %s20, 0
      %p54 = por %p52, %p53
      %p55 = scmp.ne.s32.totalorder %s44, %s47
      %p56 = scmp.eq.s32.totalorder %s25, 5
      %p57 = por %p55, %p56
      %p58 = scmp.ne.s32.totalorder %s47, %s48
      %p59 = scmp.eq.s32.totalorder %s25, 0
      %p60 = por %p58, %p59
      %p61 = scmp.ne.s32.totalorder %s47, %s48
      %p62 = scmp.eq.s32.totalorder %s26, 5
      %p63 = por %p61, %p62
      %p65 = scmp.ne.s32.totalorder %s48, %s64
      %p66 = scmp.eq.s32.totalorder %s26, 0
      %p67 = por %p65, %p66
      %s68 = ssub.s32 %s28, %s35
      %p69 = scmp.eq.s32.totalorder %s68, 0
      %s71 = sadd.s32 %s70, 1
      %s72 = scalar_select %p69, %s70, %s71
      %p75 = pneg %p69
      %p76 = scmp.eq.s32.totalorder %s20, 5
      %p77 = por %p75, %p76
      %p78 = scmp.ne.s32.totalorder %s70, %s73
      %p79 = scmp.eq.s32.totalorder %s20, 0
      %p80 = por %p78, %p79
      %p81 = scmp.ne.s32.totalorder %s70, %s73
      %p82 = scmp.eq.s32.totalorder %s25, 5
      %p83 = por %p81, %p82
      %p84 = scmp.ne.s32.totalorder %s73, %s74
      %p85 = scmp.eq.s32.totalorder %s25, 0
      %p86 = por %p84, %p85
      %p87 = scmp.ne.s32.totalorder %s73, %s74
      %p88 = scmp.eq.s32.totalorder %s26, 5
      %p89 = por %p87, %p88
      %p91 = scmp.ne.s32.totalorder %s74, %s90
      %p92 = scmp.eq.s32.totalorder %s26, 0
      %p93 = por %p91, %p92
      %s95 = sadd.s32 %s94, 1
      %p98 = scmp.eq.s32.totalorder %s20, 5
      %p99 = scmp.ne.s32.totalorder %s94, %s96
      %p100 = scmp.eq.s32.totalorder %s20, 0
      %p101 = por %p99, %p100
      %p102 = scmp.ne.s32.totalorder %s94, %s96
      %p103 = scmp.eq.s32.totalorder %s25, 5
      %p104 = por %p102, %p103
      %p105 = scmp.ne.s32.totalorder %s96, %s97
      %p106 = scmp.eq.s32.totalorder %s25, 0
      %p107 = por %p105, %p106
      %p108 = scmp.ne.s32.totalorder %s96, %s97
      %p109 = scmp.eq.s32.totalorder %s26, 5
      %p110 = por %p108, %p109
      %p112 = scmp.ne.s32.totalorder %s97, %s111
      %p113 = scmp.eq.s32.totalorder %s26, 0
      %p114 = por %p112, %p113
      %s116 = sadd.s32 %s115, 1
      %p119 = scmp.eq.s32.totalorder %s20, 5
      %p120 = scmp.ne.s32.totalorder %s115, %s117
      %p121 = scmp.eq.s32.totalorder %s20, 0
      %p122 = por %p120, %p121
      %p123 = scmp.ne.s32.totalorder %s115, %s117
      %p124 = scmp.eq.s32.totalorder %s25, 5
      %p125 = por %p123, %p124
      %p126 = scmp.ne.s32.totalorder %s117, %s118
      %p127 = scmp.eq.s32.totalorder %s25, 0
      %p128 = por %p126, %p127
      %p129 = scmp.ne.s32.totalorder %s117, %s118
      %p130 = scmp.eq.s32.totalorder %s26, 5
      %p131 = por %p129, %p130
      %p133 = scmp.ne.s32.totalorder %s118, %s132
      %p134 = scmp.eq.s32.totalorder %s26, 0
      %p135 = por %p133, %p134
      %s136 = ssub.s32 %s27, %s39
      %p137 = scmp.eq.s32.totalorder %s136, 0
      %s139 = sadd.s32 %s138, 1
      %s140 = scalar_select %p137, %s138, %s139
      %p143 = pneg %p137
      %p144 = scmp.eq.s32.totalorder %s20, 5
      %p145 = por %p143, %p144
      %p146 = scmp.ne.s32.totalorder %s138, %s141
      %p147 = scmp.eq.s32.totalorder %s20, 0
      %p148 = por %p146, %p147
      %p149 = scmp.ne.s32.totalorder %s138, %s141
      %p150 = scmp.eq.s32.totalorder %s25, 5
      %p151 = por %p149, %p150
      %p152 = scmp.ne.s32.totalorder %s141, %s142
      %p153 = scmp.eq.s32.totalorder %s25, 0
      %p154 = por %p152, %p153
      %p155 = scmp.ne.s32.totalorder %s141, %s142
      %p156 = scmp.eq.s32.totalorder %s26, 5
      %p157 = por %p155, %p156
      %p159 = scmp.ne.s32.totalorder %s142, %s158
      %p160 = scmp.eq.s32.totalorder %s26, 0
      %p161 = por %p159, %p160
      %s162 = ssub.s32 %s27, %s39
      %p163 = scmp.eq.s32.totalorder %s162, 0
      %s165 = sadd.s32 %s164, 1
      %s166 = scalar_select %p163, %s164, %s165
      %p169 = pneg %p163
      %p170 = scmp.eq.s32.totalorder %s20, 5
      %p171 = por %p169, %p170
      %p172 = scmp.ne.s32.totalorder %s164, %s167
      %p173 = scmp.eq.s32.totalorder %s20, 0
      %p174 = por %p172, %p173
      %p175 = scmp.ne.s32.totalorder %s164, %s167
      %p176 = scmp.eq.s32.totalorder %s25, 5
      %p177 = por %p175, %p176
      %p178 = scmp.ne.s32.totalorder %s167, %s168
      %p179 = scmp.eq.s32.totalorder %s25, 0
      %p180 = por %p178, %p179
      %p181 = scmp.ne.s32.totalorder %s167, %s168
      %p182 = scmp.eq.s32.totalorder %s26, 5
      %p183 = por %p181, %p182
      %p185 = scmp.ne.s32.totalorder %s168, %s184
      %p186 = scmp.eq.s32.totalorder %s26, 0
      %p187 = por %p185, %p186
      %p188 = scmp.le.s32.totalorder 1, %s20
      %p189 = scmp.lt.s32.totalorder %s20, 7
      %p190 = pnand %p188, %p189
      %p191 = pneg %p190
      // Predicated region
      $region9: #{tpu_custom_call.1} parent=5 // pred_check
        _
      $region10: #{tpu_custom_call.1} parent=5 // pred_check_branch
        %193 = sbr.rel (%p190) target = $region12
      $region11: #{tpu_custom_call.1} parent=5 // pred_region
        %s194 = ssub.s32 %s20, 1
        // Predicated region
        $region13: #{tpu_custom_call.1} parent=11 // pred_check
          %p195 = pneg %p107
        $region14: #{tpu_custom_call.1} parent=11 // pred_check_branch
          %197 = sbr.rel (%p195) target = $region16
        $region15: #{tpu_custom_call.1} parent=11 // pred_region
          _
        $region16: #{tpu_custom_call.1} parent=11 // pred_fallthru
          _
        // Predicated region
        $region17: #{tpu_custom_call.1} parent=11 // pred_check
          %p198 = pneg %p128
        $region18: #{tpu_custom_call.1} parent=11 // pred_check_branch
          %200 = sbr.rel (%p198) target = $region20
        $region19: #{tpu_custom_call.1} parent=11 // pred_region
          %202 = vsyncadd [#allocation7], 0
          %s203 = sshll.u32 %s3, 4
          %s204 = int_to_ptr.hbm [resolvable:$true] %s203
          %s205 = sshll.u32 [#allocation8], 4
          %s206 = int_to_ptr.vmem [resolvable:$true] %s205
          %211 = dma.hbm_to_vmem [thread:$0]  %s204, 2048, %s206, [#allocation7], 128, 128, 8
        $region20: #{tpu_custom_call.1} parent=11 // pred_fallthru
          _
      $region12: #{tpu_custom_call.1} parent=5 // pred_fallthru
        _
      %p212 = scmp.lt.s32.totalorder %s20, 6
      // Predicated region
      $region21: #{tpu_custom_call.1} parent=5 // pred_check
        %p213 = pneg %p212
      $region22: #{tpu_custom_call.1} parent=5 // pred_check_branch
        %215 = sbr.rel (%p213) target = $region24
      $region23: #{tpu_custom_call.1} parent=5 // pred_region
        // Predicated region
        $region25: #{tpu_custom_call.1} parent=23 // pred_check
          %p216 = pneg %p54
        $region26: #{tpu_custom_call.1} parent=23 // pred_check_branch
          %218 = sbr.rel (%p216) target = $region28
        $region27: #{tpu_custom_call.1} parent=23 // pred_region
          %s219 = sand.u32 %s44, 1
          %s220 = scalar_lea.sflag [#allocation4], %s219
          %s221 = sand.u32 %s44, 1
          %s222 = smul.addr %s221, 8
          %s223 = scalar_lea.vmem [#allocation3], %s222
          %225 = vsyncadd %s220, 0
          %s226 = smul.addr %s27, 2
          %s227 = sadd.s32 %s28, %s226
          %s228 = smul.addr %s227, 8
          %s229 = scalar_lea.hbm %s0, %s228
          %s231 = sshll.u32 %s229, 4
          %s232 = int_to_ptr.hbm [resolvable:$true] %s231
          %s233 = sshll.u32 %s223, 4
          %s234 = int_to_ptr.vmem [resolvable:$true] %s233
          %236 = dma.hbm_to_vmem [thread:$0]  %s232, 128, %s234, %s220
        $region28: #{tpu_custom_call.1} parent=23 // pred_fallthru
          _
        // Predicated region
        $region29: #{tpu_custom_call.1} parent=23 // pred_check
          %p237 = pneg %p80
        $region30: #{tpu_custom_call.1} parent=23 // pred_check_branch
          %239 = sbr.rel (%p237) target = $region32
        $region31: #{tpu_custom_call.1} parent=23 // pred_region
          %s240 = sand.u32 %s20, 1
          %s241 = scalar_lea.sflag [#allocation7], %s240
          %s242 = sand.u32 %s70, 1
          %s243 = smul.addr %s242, 128
          %s244 = scalar_lea.vmem [#allocation6], %s243
          %s245 = smul.u32 16, %s28
          %247 = vsyncadd %s241, 0
          %s248 = smul.addr %s245, 8
          %s249 = scalar_lea.hbm %s1, %s248
          %s250 = sshll.u32 %s249, 4
          %s251 = int_to_ptr.hbm [resolvable:$true] %s250
          %s252 = sshll.u32 %s244, 4
          %s253 = int_to_ptr.vmem [resolvable:$true] %s252
          %258 = dma.hbm_to_vmem [thread:$0]  %s251, 2048, %s253, %s241, 128, 128, 8
        $region32: #{tpu_custom_call.1} parent=23 // pred_fallthru
          _
        // Predicated region
        $region33: #{tpu_custom_call.1} parent=23 // pred_check
          %p259 = pneg %p148
        $region34: #{tpu_custom_call.1} parent=23 // pred_check_branch
          %261 = sbr.rel (%p259) target = $region36
        $region35: #{tpu_custom_call.1} parent=23 // pred_region
          %p262 = scmp.lt.s32.totalorder %s27, 2
          %s263 = scalar_select %p262, %s27, 2
          %s264 = smul.addr %s263, 8
          %s265 = scalar_lea.vmem %s4, %s264
        $region36: #{tpu_custom_call.1} parent=23 // pred_fallthru
          _
      $region24: #{tpu_custom_call.1} parent=5 // pred_fallthru
        _
      %p266 = scmp.le.s32.totalorder 1, %s20
      %p267 = scmp.lt.s32.totalorder %s20, 7
      %p268 = pnand %p266, %p267
      %p269 = pneg %p268
      // Predicated region
      $region37: #{tpu_custom_call.1} parent=5 // pred_check
        _
      $region38: #{tpu_custom_call.1} parent=5 // pred_check_branch
        %271 = sbr.rel (%p268) target = $region40
      $region39: #{tpu_custom_call.1} parent=5 // pred_region
        %s272 = ssub.s32 %s20, 1
        %s273 = sand.u32 %s47, 1
        %s274 = scalar_lea.sflag [#allocation4], %s273
        %s275 = sand.u32 %s47, 1
        %s276 = smul.addr %s275, 8
        %s277 = scalar_lea.vmem [#allocation3], %s276
        // Predicated region
        $region41: #{tpu_custom_call.1} parent=39 // pred_check
          %p278 = pneg %p60
        $region42: #{tpu_custom_call.1} parent=39 // pred_check_branch
          %280 = sbr.rel (%p278) target = $region44
        $region43: #{tpu_custom_call.1} parent=39 // pred_region
          %282 = dma.done %s274, 128
        $region44: #{tpu_custom_call.1} parent=39 // pred_fallthru
          _
        %s283 = sand.u32 %s25, 1
        %s284 = scalar_lea.sflag [#allocation7], %s283
        %s285 = sand.u32 %s73, 1
        %s286 = smul.addr %s285, 128
        %s287 = scalar_lea.vmem [#allocation6], %s286
        // Predicated region
        $region45: #{tpu_custom_call.1} parent=39 // pred_check
          %p288 = pneg %p86
        $region46: #{tpu_custom_call.1} parent=39 // pred_check_branch
          %290 = sbr.rel (%p288) target = $region48
        $region47: #{tpu_custom_call.1} parent=39 // pred_region
          %292 = dma.done %s284, 2048
        $region48: #{tpu_custom_call.1} parent=39 // pred_fallthru
          _
        // Predicated region
        $region49: #{tpu_custom_call.1} parent=39 // pred_check
          %p293 = pneg %p128
        $region50: #{tpu_custom_call.1} parent=39 // pred_check_branch
          %295 = sbr.rel (%p293) target = $region52
        $region51: #{tpu_custom_call.1} parent=39 // pred_region
          %297 = dma.done [#allocation7], 2048
        $region52: #{tpu_custom_call.1} parent=39 // pred_fallthru
          _
        %s298 = sand.u32 %s47, 1
        %s299 = scalar_lea.sflag [#allocation4], %s298
        %s300 = sand.u32 %s47, 1
        %s301 = smul.addr %s300, 8
        %s302 = scalar_lea.vmem [#allocation3], %s301
        %p303 = pneg %p60
        %p304 = pneg %p57
        %s305 = sand.u32 %s25, 1
        %s306 = scalar_lea.sflag [#allocation7], %s305
        %s307 = sand.u32 %s73, 1
        %s308 = smul.addr %s307, 128
        %s309 = scalar_lea.vmem [#allocation6], %s308
        %p310 = pneg %p86
        %p311 = pneg %p83
        %p312 = pneg %p107
        %p313 = pneg %p104
        %p314 = pneg %p128
        %p315 = pneg %p125
        %p316 = scmp.lt.s32.totalorder %s29, 2
        %s317 = scalar_select %p316, %s29, 2
        %s318 = smul.addr %s317, 8
        %s319 = scalar_lea.vmem %s4, %s318
        %p320 = pneg %p154
        %p321 = pneg %p151
        %p322 = pneg %p180
        %p323 = pneg %p177
        %s324 = sand.u32 %s167, 1
        %s325 = scalar_lea.sflag [#allocation5], %s324
        %s326 = sand.u32 %s167, 1
        %s327 = smul.addr %s326, 8
        %s328 = scalar_lea.vmem [#allocation9], %s327
        %s329 = smul.u32 16, %s30
        %p330 = scmp.lt.s32.totalorder %s29, 2
        %s331 = scalar_select %p330, %s29, 2
        %s332 = smul.addr %s331, 8
        %s333 = scalar_lea.vmem %s4, %s332
        %p334 = scmp.eq.s32.totalorder %s30, 0
        // Predicated region
        $region53: #{tpu_custom_call.1} parent=39 // pred_check
          %p335 = pneg %p334
        $region54: #{tpu_custom_call.1} parent=39 // pred_check_branch
          %337 = sbr.rel (%p335) target = $region56
        $region55: #{tpu_custom_call.1} parent=39 // pred_region
          %v338 = vld [vmem:[%s2] sm:$0x1]
          %v340 = vperm.slane %v338, 0
          %342 = vst [vmem:[#allocation2] sm:$0xff] %v340
        $region56: #{tpu_custom_call.1} parent=39 // pred_fallthru
          _
        %v343 = vld [vmem:[#allocation2] sm:$0xff]
        %v344 = vld [vmem:[%s277] sm:$0xff]
        %v345 = vld [vmem:[%s287] sm:$0xff]
        %v346 = vld [vmem:[%s287 + $0x8] sm:$0xff]
        %v347 = vld [vmem:[%s287 + $0x10] sm:$0xff]
        %v348 = vld [vmem:[%s287 + $0x18] sm:$0xff]
        %v349 = vld [vmem:[%s287 + $0x20] sm:$0xff]
        %v350 = vld [vmem:[%s287 + $0x28] sm:$0xff]
        %v351 = vld [vmem:[%s287 + $0x30] sm:$0xff]
        %v352 = vld [vmem:[%s287 + $0x38] sm:$0xff]
        %v353 = vld [vmem:[%s287 + $0x40] sm:$0xff]
        %v354 = vld [vmem:[%s287 + $0x48] sm:$0xff]
        %v355 = vld [vmem:[%s287 + $0x50] sm:$0xff]
        %v356 = vld [vmem:[%s287 + $0x58] sm:$0xff]
        %v357 = vld [vmem:[%s287 + $0x60] sm:$0xff]
        %v358 = vld [vmem:[%s287 + $0x68] sm:$0xff]
        %v359 = vld [vmem:[%s287 + $0x70] sm:$0xff]
        %v360 = vld [vmem:[%s287 + $0x78] sm:$0xff]
        %361 = vmatpush.msra.mxu0 %v360
        %362 = vmatpush.msra.mxu0 %v359
        %363 = vmatpush.msra.mxu0 %v358
        %364 = vmatpush.msra.mxu0 %v357
        %365 = vmatpush.msra.mxu0 %v356
        %366 = vmatpush.msra.mxu0 %v355
        %367 = vmatpush.msra.mxu0 %v354
        %368 = vmatpush.msra.mxu0 %v353
        %369 = vmatpush.msra.mxu0 %v352
        %370 = vmatpush.msra.mxu0 %v351
        %371 = vmatpush.msra.mxu0 %v350
        %372 = vmatpush.msra.mxu0 %v349
        %373 = vmatpush.msra.mxu0 %v348
        %374 = vmatpush.msra.mxu0 %v347
        %375 = vmatpush.msra.mxu0 %v346
        %376 = vmatpush.msra.mxu0 %v345
        %377 = vmatmul.f32.gmra.mxu0 %v344
        %v378 = vpop.f32.mrf.mxu0
        %v379 = vadd.f32 0.0, %v378
        %380 = vdwg.mxu0
        %v381 = vadd.f32 %v343, %v379
        %382 = vst [vmem:[#allocation2] sm:$0xff] %v381
        %p383 = scmp.eq.s32.totalorder %s30, 1
        // Predicated region
        $region57: #{tpu_custom_call.1} parent=39 // pred_check
          %p384 = pneg %p383
        $region58: #{tpu_custom_call.1} parent=39 // pred_check_branch
          %386 = sbr.rel (%p384) target = $region60
        $region59: #{tpu_custom_call.1} parent=39 // pred_region
          %v387 = vld [vmem:[#allocation2] sm:$0xff]
          %v388 = vmul.f32 %v387, %v387
          %389 = vadd.xlane.f32.xlu0 %v388
          %v390 = vpop.xlane.xlu0 %389
          %v391 = vmax.f32 %v390, 1e-30
          %v392 = vrsqrt.pop %v391
          %v393 = vmul.f32 %v392, %v391
          %v394 = vmul.f32 %v393, %v392
          %v395 = vmul.f32 0.5, %v394
          %v396 = vsub.f32 1.5, %v395
          %v397 = vmul.f32 %v392, %v396
          %vm398 = vweird.f32 %v391
          %vm399 = vweird.f32 %v392
          %vm400 = vmor %vm398, %vm399
          %v401 = vsel %vm400, %v392, %v397
          %v402 = vmul.f32 %v387, %v401
          %v403 = vld [vmem:[#allocation8] sm:$0xff]
          %v404 = vld [vmem:[#allocation8 + $0x8] sm:$0xff]
          %v405 = vld [vmem:[#allocation8 + $0x10] sm:$0xff]
          %v406 = vld [vmem:[#allocation8 + $0x18] sm:$0xff]
          %v407 = vld [vmem:[#allocation8 + $0x20] sm:$0xff]
          %v408 = vld [vmem:[#allocation8 + $0x28] sm:$0xff]
          %v409 = vld [vmem:[#allocation8 + $0x30] sm:$0xff]
          %v410 = vld [vmem:[#allocation8 + $0x38] sm:$0xff]
          %v411 = vld [vmem:[#allocation8 + $0x40] sm:$0xff]
          %v412 = vld [vmem:[#allocation8 + $0x48] sm:$0xff]
          %v413 = vld [vmem:[#allocation8 + $0x50] sm:$0xff]
          %v414 = vld [vmem:[#allocation8 + $0x58] sm:$0xff]
          %v415 = vld [vmem:[#allocation8 + $0x60] sm:$0xff]
          %v416 = vld [vmem:[#allocation8 + $0x68] sm:$0xff]
          %v417 = vld [vmem:[#allocation8 + $0x70] sm:$0xff]
          %v418 = vld [vmem:[#allocation8 + $0x78] sm:$0xff]
          %419 = vmatpush.msra.mxu0 %v418
          %420 = vmatpush.msra.mxu0 %v417
          %421 = vmatpush.msra.mxu0 %v416
          %422 = vmatpush.msra.mxu0 %v415
          %423 = vmatpush.msra.mxu0 %v414
          %424 = vmatpush.msra.mxu0 %v413
          %425 = vmatpush.msra.mxu0 %v412
          %426 = vmatpush.msra.mxu0 %v411
          %427 = vmatpush.msra.mxu0 %v410
          %428 = vmatpush.msra.mxu0 %v409
          %429 = vmatpush.msra.mxu0 %v408
          %430 = vmatpush.msra.mxu0 %v407
          %431 = vmatpush.msra.mxu0 %v406
          %432 = vmatpush.msra.mxu0 %v405
          %433 = vmatpush.msra.mxu0 %v404
          %434 = vmatpush.msra.mxu0 %v403
          %435 = vmatmul.f32.gmra.mxu0 %v402
          %v436 = vpop.f32.mrf.mxu0
          %v437 = vadd.f32 0.0, %v436
          %438 = vdwg.mxu0
          %v439 = vlaneseq
          %v440 = vand.u32 %v439, 127
          %v441 = vld [vmem:[%s333] sm:$0xff]
          %442 = vset.pattern.permute.xlu0 0
          %443 = vperm.xlu0 %442, %v441
          %v444 = vpop.permute.xlu0 %443
          %vm445 = vcmp.eq.s32.totalorder %v440, %v444
          %vm446 = vcmp.ge.s32.totalorder %v440, 10
          %v447 = vsel %vm445, %v437, 0.0
          %448 = vadd.xlane.f32.xlu0 %v447
          %v449 = vpop.xlane.xlu0 %448
          %vm450 = vmor %vm445, %vm446
          %v451 = vsel %vm450, -inf, %v437
          %452 = vmax.xlane.f32.xlu0 %v451
          %v453 = vpop.xlane.xlu0 %452
          %v454 = vsub.f32 %v453, %v449
          %v455 = vadd.f32 %v454, 1.0
          %v456 = vmax.f32 %v455, 0.0
          %457 = vst [vmem:[%s328] sm:$0xff] %v456
        $region60: #{tpu_custom_call.1} parent=39 // pred_fallthru
          _
        %s458 = sand.u32 %s167, 1
        %s459 = scalar_lea.sflag [#allocation5], %s458
        %s460 = sand.u32 %s167, 1
        %s461 = smul.addr %s460, 8
        %s462 = scalar_lea.vmem [#allocation9], %s461
        // Predicated region
        $region61: #{tpu_custom_call.1} parent=39 // pred_check
          %p463 = pneg %p177
        $region62: #{tpu_custom_call.1} parent=39 // pred_check_branch
          %465 = sbr.rel (%p463) target = $region64
        $region63: #{tpu_custom_call.1} parent=39 // pred_region
          %467 = vsyncadd %s459, 0
          %s468 = smul.addr %s29, 8
          %s469 = scalar_lea.hbm %s5, %s468
          %s471 = sshll.u32 %s462, 4
          %s472 = int_to_ptr.vmem [resolvable:$true] %s471
          %s473 = sshll.u32 %s469, 4
          %s474 = int_to_ptr.hbm [resolvable:$true] %s473
          %476 = dma.vmem_to_hbm [thread:$0]  %s472, 128, %s474, %s459
        $region64: #{tpu_custom_call.1} parent=39 // pred_fallthru
          _
      $region40: #{tpu_custom_call.1} parent=5 // pred_fallthru
        _
      %p477 = scmp.le.s32.totalorder 2, %s20
      // Predicated region
      $region65: #{tpu_custom_call.1} parent=5 // pred_check
        %p478 = pneg %p477
      $region66: #{tpu_custom_call.1} parent=5 // pred_check_branch
        %480 = sbr.rel (%p478) target = $region68
      $region67: #{tpu_custom_call.1} parent=5 // pred_region
        %s481 = ssub.s32 %s20, 2
        // Predicated region
        $region69: #{tpu_custom_call.1} parent=67 // pred_check
          %p482 = pneg %p183
        $region70: #{tpu_custom_call.1} parent=67 // pred_check_branch
          %484 = sbr.rel (%p482) target = $region72
        $region71: #{tpu_custom_call.1} parent=67 // pred_region
          %s485 = sand.u32 %s168, 1
          %s486 = scalar_lea.sflag [#allocation5], %s485
          %s487 = sand.u32 %s168, 1
          %s488 = smul.addr %s487, 8
          %s489 = scalar_lea.vmem [#allocation9], %s488
          %491 = dma.done %s486, 128
        $region72: #{tpu_custom_call.1} parent=67 // pred_fallthru
          _
      $region68: #{tpu_custom_call.1} parent=5 // pred_fallthru
        _
    $region6: #{tpu_custom_call.1} parent=1 // loop_footer
      %s24 = sadd.s32 1, %s20
    $region7: #{tpu_custom_call.1} parent=1 // loop_footer_branch
      %19 = sbr.rel target = $region3
    $region8: #{tpu_custom_call.1} parent=1 // loop_exit
      _
    %492 = vsyncpa [#allocation4], 1
    %s493 = scalar_lea.sflag [#allocation4], 1
    %494 = vsyncpa %s493, 1
    %495 = vsyncpa [#allocation7], 1
    %s496 = scalar_lea.sflag [#allocation7], 1
    %497 = vsyncpa %s496, 1
    %498 = vsyncpa [#allocation5], 1
    %s499 = scalar_lea.sflag [#allocation5], 1
    %500 = vsyncpa %s499, 1

</llo_original>
